<compile_context>
chip_gen: v5e
topology: v5e:2x2
jax: 0.10.0
libtpu: 0.0.40
codegen_flags: <defaults>
</compile_context>

<pallas_src>
from typing import NamedTuple, Optional

import jax
import jax.numpy as jnp
from jax.experimental import pallas as pl
from jax.experimental.pallas import tpu as pltpu

TEXT_MODALITY_INDEX = 0


class Config(NamedTuple):
    vocab_size: int = 64
    emb_dim: int = 32
    head_dim: int = 8
    decoder_max_text_length: int = 16
    text_pos_emb: str = "llama_rope"


class TargetSequence(NamedTuple):
    input_embedding: jnp.ndarray      # (bs, seq, emb_dim)
    position_embed: jnp.ndarray       # (bs, seq, emb_dim)
    modality_id: jnp.ndarray          # () int32
    mask: Optional[jnp.ndarray]
    attn_pattern_mask: jnp.ndarray    # (bs, 4, seq, seq)
    subsegments: Optional[jnp.ndarray]
    target_tokens: Optional[jnp.ndarray]
    loss_mask: Optional[jnp.ndarray]


# ----------------------------------------------------------------------------
# Parameter / buffer initialization (deterministic, in-script)
# ----------------------------------------------------------------------------
def _pos_emb_cache(cfg: Config) -> jnp.ndarray:
    # TODO(synk): approximates layers.get_1d_position_embedding('llama_rope', ...)
    # with a deterministic rope-style cos/sin cache of shape (max_len, emb_dim).
    max_len, dim = cfg.decoder_max_text_length, cfg.emb_dim
    half = dim // 2
    freqs = 1.0 / (10000.0 ** (jnp.arange(half, dtype=jnp.float32) / half))
    ang = jnp.arange(max_len, dtype=jnp.float32)[:, None] * freqs[None, :]
    return jnp.concatenate([jnp.cos(ang), jnp.sin(ang)], axis=-1)


def init_params(cfg: Config, key) -> dict:
    k_embed, k_mod = jax.random.split(key)
    shared_embed = 0.02 * jax.random.normal(
        k_embed, (cfg.vocab_size, cfg.emb_dim), jnp.float32)
    modality_embedding = 0.02 * jax.random.normal(
        k_mod, (cfg.emb_dim,), jnp.float32)
    return {
        "shared_embed": shared_embed,                 # nn.Embedding weight
        "modality_embedding": modality_embedding,     # nn.Parameter (llama_rope)
        "pos_emb_cache": _pos_emb_cache(cfg),         # registered buffer
    }


def _round_up(x: int, m: int) -> int:
    return ((x + m - 1) // m) * m


# ----------------------------------------------------------------------------
# Pallas kernel: per token-chunk, one-hot MXU gather + modality add.
# ----------------------------------------------------------------------------
def _embed_kernel(tok_ref, pos_ref, table_ref, cache_ref, mod_ref,
                  x_ref, pe_ref):
    chunk = tok_ref.shape[0]
    vocab = table_ref.shape[0]
    max_len = cache_ref.shape[0]

    tok = tok_ref[...]                       # (chunk, 1) int32
    pos = pos_ref[...]                       # (chunk, 1) int32

    # One-hot selection matrices (VPU compare), gathers as MXU matmuls.
    # Precision.HIGHEST makes the f32 one-hot matmul bit-exact w.r.t. a real
    # row gather.  Out-of-range ids give an all-zero row (no OOB access).
    tok_oh = (tok == jax.lax.broadcasted_iota(jnp.int32, (chunk, vocab), 1)
              ).astype(jnp.float32)
    pos_oh = (pos == jax.lax.broadcasted_iota(jnp.int32, (chunk, max_len), 1)
              ).astype(jnp.float32)

    x = jnp.dot(tok_oh, table_ref[...],
                preferred_element_type=jnp.float32,
                precision=jax.lax.Precision.HIGHEST)
    pe = jnp.dot(pos_oh, cache_ref[...],
                 preferred_element_type=jnp.float32,
                 precision=jax.lax.Precision.HIGHEST)

    x_ref[...] = (x + mod_ref[...]).astype(x_ref.dtype)   # (1,emb) broadcasts
    pe_ref[...] = pe.astype(pe_ref.dtype)


def text_embedder_forward(params, cfg: Config, inputs,
                          mask=None, pos_ids=None, segment_ids=None,
                          targets=None, cur_index=None) -> TargetSequence:
    bs, seq = inputs.shape
    emb_dim = cfg.emb_dim
    vocab = cfg.vocab_size
    max_len = cfg.decoder_max_text_length

    if pos_ids is None:
        if cur_index is not None:
            pos_ids = jnp.full_like(inputs, cur_index)
        else:
            pos_ids = jnp.broadcast_to(
                jnp.arange(seq, dtype=jnp.int32)[None, :], (bs, seq))
    pos_ids = pos_ids.astype(jnp.int32)

    # VMEM-resident lookup tables (a few KiB each at these sizes).
    table = params["shared_embed"]                       # (vocab, emb)
    cache = params["pos_emb_cache"]                      # (max_len, emb)
    if "llama_rope" in cfg.text_pos_emb:
        mod = params["modality_embedding"].reshape(1, emb_dim)
    else:
        mod = jnp.zeros((1, emb_dim), jnp.float32)

    # Token-chunk tiling: big chunks at scale, one chunk at toy sizes.
    n = bs * seq
    chunk = 256 if n >= 256 else _round_up(n, 8)
    padded_n = _round_up(n, chunk)

    tok_flat = inputs.reshape(-1).astype(jnp.int32)
    pos_flat = pos_ids.reshape(-1)
    if padded_n != n:
        tok_flat = jnp.pad(tok_flat, (0, padded_n - n))
        pos_flat = jnp.pad(pos_flat, (0, padded_n - n))
    tok_flat = tok_flat[:, None]                         # (padded_n, 1)
    pos_flat = pos_flat[:, None]                         # (padded_n, 1)

    grid_spec = pltpu.PrefetchScalarGridSpec(
        num_scalar_prefetch=0,
        grid=(padded_n // chunk,),
        in_specs=[
            pl.BlockSpec((chunk, 1), lambda i: (i, 0)),          # token ids
            pl.BlockSpec((chunk, 1), lambda i: (i, 0)),          # pos ids
            pl.BlockSpec((vocab, emb_dim), lambda i: (0, 0)),    # resident table
            pl.BlockSpec((max_len, emb_dim), lambda i: (0, 0)),  # resident cache
            pl.BlockSpec((1, emb_dim), lambda i: (0, 0)),        # modality emb
        ],
        out_specs=[
            pl.BlockSpec((chunk, emb_dim), lambda i: (i, 0)),
            pl.BlockSpec((chunk, emb_dim), lambda i: (i, 0)),
        ],
    )

    x_flat, pe_flat = pl.pallas_call(
        _embed_kernel,
        grid_spec=grid_spec,
        out_shape=(
            jax.ShapeDtypeStruct((padded_n, emb_dim), jnp.float32),
            jax.ShapeDtypeStruct((padded_n, emb_dim), jnp.float32),
        ),
        compiler_params=pltpu.CompilerParams(
            # Disjoint output blocks per chunk -> safe to shard across the
            # two TensorCores on v7x; no-op on v5e/v6e.
            dimension_semantics=("parallel",)),
    )(tok_flat, pos_flat, table, cache, mod)

    x = x_flat[:n].reshape(bs, seq, emb_dim)
    pos_emb = pe_flat[:n].reshape(bs, seq, emb_dim)

    # Constant outputs stay in plain JAX: broadcast (no kernel traffic; XLA
    # fuses / keeps it lazy under jit).
    attn_pattern_mask = jnp.broadcast_to(
        jnp.ones((), dtype=x.dtype), (bs, 4, seq, seq))
    modality_id = jnp.asarray(TEXT_MODALITY_INDEX, dtype=jnp.int32)

    return TargetSequence(
        input_embedding=x,
        position_embed=pos_emb,
        modality_id=modality_id,
        mask=mask,
        attn_pattern_mask=attn_pattern_mask,
        subsegments=segment_ids,
        target_tokens=targets,
        loss_mask=mask,
    )


# ----------------------------------------------------------------------------
# Demo / smoke test
# ----------------------------------------------------------------------------
if __name__ == "__main__":
    cfg = Config()
    key = jax.random.PRNGKey(0)
    k_params, k_tokens = jax.random.split(key)

    params = init_params(cfg, k_params)

    bs, seq = 2, 8
    inputs = jax.random.randint(
        k_tokens, (bs, seq), 0, cfg.vocab_size, dtype=jnp.int32)

    out = text_embedder_forward(params, cfg, inputs)

    jax.block_until_ready(out.input_embedding)
    jax.block_until_ready(out.position_embed)
    jax.block_until_ready(out.attn_pattern_mask)

    # sanity: kernel result must match pure-JAX reference
    ref_x = params["shared_embed"][inputs] + params["modality_embedding"][None, None, :]
    ref_pe = params["pos_emb_cache"][
        jnp.broadcast_to(jnp.arange(seq)[None, :], (bs, seq))]
    assert jnp.allclose(out.input_embedding, ref_x, atol=1e-6)
    assert jnp.allclose(out.position_embed, ref_pe, atol=1e-6)
    assert out.attn_pattern_mask.shape == (bs, 4, seq, seq)
    assert int(out.modality_id) == TEXT_MODALITY_INDEX

    print("KERNEL_OK")
</pallas_src>

<mosaic_0001>
module attributes {stable_mosaic.version = 11 : i64} {
  func.func @_embed_kernel(%arg0: i32, %arg1: memref<16x1xi32, #tpu.memory_space<vmem>>, %arg2: memref<16x1xi32, #tpu.memory_space<vmem>>, %arg3: memref<64x32xf32, #tpu.memory_space<vmem>>, %arg4: memref<16x32xf32, #tpu.memory_space<vmem>>, %arg5: memref<1x32xf32, #tpu.memory_space<vmem>>, %arg6: memref<16x32xf32, #tpu.memory_space<vmem>>, %arg7: memref<16x32xf32, #tpu.memory_space<vmem>>) attributes {dimension_semantics = [#tpu.dimension_semantics<parallel>], iteration_bounds = array<i64: 1>, scalar_prefetch = 0 : i64, scratch_operands = 0 : i64, tpu.core_type = #tpu.core_type<tc>, window_params = [{transform_indices = @transform_0, window_bounds = array<i64: 16, 1>}, {transform_indices = @transform_1, window_bounds = array<i64: 16, 1>}, {pipeline_mode = #tpu.pipeline_mode<synchronous>, transform_indices = @transform_2, window_bounds = array<i64: 64, 32>}, {pipeline_mode = #tpu.pipeline_mode<synchronous>, transform_indices = @transform_3, window_bounds = array<i64: 16, 32>}, {pipeline_mode = #tpu.pipeline_mode<synchronous>, transform_indices = @transform_4, window_bounds = array<i64: 1, 32>}, {transform_indices = @transform_5, window_bounds = array<i64: 16, 32>}, {transform_indices = @transform_6, window_bounds = array<i64: 16, 32>}]} {
    %c0 = arith.constant 0 : index
    %c0_0 = arith.constant 0 : index
    %0 = vector.load %arg1[%c0, %c0_0] : memref<16x1xi32, #tpu.memory_space<vmem>>, vector<16x1xi32>
    %c0_1 = arith.constant 0 : index
    %c0_2 = arith.constant 0 : index
    %1 = vector.load %arg2[%c0_1, %c0_2] : memref<16x1xi32, #tpu.memory_space<vmem>>, vector<16x1xi32>
    %2 = tpu.iota {dimensions = array<i32: 1>} : vector<16x64xi32>
    %3 = vector.broadcast %0 : vector<16x1xi32> to vector<16x64xi32>
    %4 = arith.cmpi eq, %3, %2 : vector<16x64xi32>
    %5 = arith.extui %4 : vector<16x64xi1> to vector<16x64xi32>
    %6 = arith.sitofp %5 : vector<16x64xi32> to vector<16x64xf32>
    %7 = tpu.iota {dimensions = array<i32: 1>} : vector<16x16xi32>
    %8 = vector.broadcast %1 : vector<16x1xi32> to vector<16x16xi32>
    %9 = arith.cmpi eq, %8, %7 : vector<16x16xi32>
    %10 = arith.extui %9 : vector<16x16xi1> to vector<16x16xi32>
    %11 = arith.sitofp %10 : vector<16x16xi32> to vector<16x16xf32>
    %c0_3 = arith.constant 0 : index
    %c0_4 = arith.constant 0 : index
    %12 = vector.load %arg3[%c0_3, %c0_4] : memref<64x32xf32, #tpu.memory_space<vmem>>, vector<64x32xf32>
    %cst = arith.constant dense<0.000000e+00> : vector<16x32xf32>
    %13 = tpu.matmul %6, %12, %cst {dimension_numbers = #tpu.dot_dimension_numbers<[1], [0], [0], [1], [0, 0, 1, 1], [], []>, precision = #tpu.contract_precision<fp32>} : vector<16x64xf32>, vector<64x32xf32>, vector<16x32xf32> -> vector<16x32xf32>
    %c0_5 = arith.constant 0 : index
    %c0_6 = arith.constant 0 : index
    %14 = vector.load %arg4[%c0_5, %c0_6] : memref<16x32xf32, #tpu.memory_space<vmem>>, vector<16x32xf32>
    %cst_7 = arith.constant dense<0.000000e+00> : vector<16x32xf32>
    %15 = tpu.matmul %11, %14, %cst_7 {dimension_numbers = #tpu.dot_dimension_numbers<[1], [0], [0], [1], [0, 0, 1, 1], [], []>, precision = #tpu.contract_precision<fp32>} : vector<16x16xf32>, vector<16x32xf32>, vector<16x32xf32> -> vector<16x32xf32>
    %c0_8 = arith.constant 0 : index
    %c0_9 = arith.constant 0 : index
    %16 = vector.load %arg5[%c0_8, %c0_9] : memref<1x32xf32, #tpu.memory_space<vmem>>, vector<1x32xf32>
    %17 = vector.broadcast %16 : vector<1x32xf32> to vector<16x32xf32>
    %18 = arith.addf %13, %17 : vector<16x32xf32>
    %c0_10 = arith.constant 0 : index
    %c0_11 = arith.constant 0 : index
    %19 = vector.load %arg6[%c0_10, %c0_11] : memref<16x32xf32, #tpu.memory_space<vmem>>, vector<16x32xf32>
    tpu.vector_store %arg6[%c0_10, %c0_11], %18 {strides = array<i32>} : memref<16x32xf32, #tpu.memory_space<vmem>>, vector<16x32xf32>,
    %c0_12 = arith.constant 0 : index
    %c0_13 = arith.constant 0 : index
    %20 = vector.load %arg7[%c0_12, %c0_13] : memref<16x32xf32, #tpu.memory_space<vmem>>, vector<16x32xf32>
    tpu.vector_store %arg7[%c0_12, %c0_13], %15 {strides = array<i32>} : memref<16x32xf32, #tpu.memory_space<vmem>>, vector<16x32xf32>,
    return
  }
  func.func @transform_0(%arg0: i32) -> (i32, i32) {
    %c0_i32 = arith.constant 0 : i32
    %c0_i32_0 = arith.constant 0 : i32
    return %arg0, %c0_i32 : i32, i32
  }
  func.func @transform_1(%arg0: i32) -> (i32, i32) {
    %c0_i32 = arith.constant 0 : i32
    %c0_i32_0 = arith.constant 0 : i32
    return %arg0, %c0_i32 : i32, i32
  }
  func.func @transform_2(%arg0: i32) -> (i32, i32) {
    %c0_i32 = arith.constant 0 : i32
    %c0_i32_0 = arith.constant 0 : i32
    %c0_i32_1 = arith.constant 0 : i32
    return %c0_i32, %c0_i32_0 : i32, i32
  }
  func.func @transform_3(%arg0: i32) -> (i32, i32) {
    %c0_i32 = arith.constant 0 : i32
    %c0_i32_0 = arith.constant 0 : i32
    %c0_i32_1 = arith.constant 0 : i32
    return %c0_i32, %c0_i32_0 : i32, i32
  }
  func.func @transform_4(%arg0: i32) -> (i32, i32) {
    %c0_i32 = arith.constant 0 : i32
    %c0_i32_0 = arith.constant 0 : i32
    %c0_i32_1 = arith.constant 0 : i32
    return %c0_i32, %c0_i32_0 : i32, i32
  }
  func.func @transform_5(%arg0: i32) -> (i32, i32) {
    %c0_i32 = arith.constant 0 : i32
    %c0_i32_0 = arith.constant 0 : i32
    return %arg0, %c0_i32 : i32, i32
  }
  func.func @transform_6(%arg0: i32) -> (i32, i32) {
    %c0_i32 = arith.constant 0 : i32
    %c0_i32_0 = arith.constant 0 : i32
    return %arg0, %c0_i32 : i32, i32
  }
}

</mosaic_0001>

<llo_original>
// kernel: tpu_custom_call.1
$region0: #{tpu_custom_call.1}
  #allocation0 [shape = 'u32[]', space=smem, size = 0x4, offset = 0x4, fixed_abs, tag = 'smem constant byte address 0x4 - core index']
  #allocation1 [shape = 'u32[72,128]{1,0:T(1,128)}', space=vmem, size = 0x9000, scoped, tag = 'internal scratch']
  %s0 = inlined_call_operand.vmem [shape: s32[16,1], index: 0, kind: input, shape index: {}]
  %s1 = inlined_call_operand.vmem [shape: s32[16,1], index: 1, kind: input, shape index: {}]
  %s2 = inlined_call_operand.vmem [shape: f32[64,32], index: 2, kind: input, shape index: {}]
  %s3 = inlined_call_operand.vmem [shape: f32[16,32], index: 3, kind: input, shape index: {}]
  %s4 = inlined_call_operand.vmem [shape: f32[1,32], index: 4, kind: input, shape index: {}]
  %s5 = inlined_call_operand.hbm [shape: f32[16,32], index: 5, kind: output, shape index: {0}]
  %s6 = inlined_call_operand.hbm [shape: f32[16,32], index: 6, kind: output, shape index: {1}]
  %7 = xla_tuple %s5, %s6
  %s8 = sld [smem:[#allocation0]]
  $region38: #{tpu_custom_call.1} parent=0
    _
  %s10 = ssub.s32 1, %s8
  %s11 = scalar_select 0, %s10, %s8
  $region1: #{tpu_custom_call.1} parent=0
    #allocation2 [shape = 'u8[8192]{0}', space=vmem, size = 0x2000, scoped, tag = 'output window, operand 0, single buffered']
    #allocation3 [shape = 's32[1]{0}', space=sflag, size = 0x4, scoped, tag = 'scoped memory for tpu_custom_call.1']
    #allocation4 [shape = 'u8[8192]{0}', space=vmem, size = 0x2000, scoped, tag = 'output window, operand 1, single buffered']
    #allocation5 [shape = 's32[1]{0}', space=sflag, size = 0x4, scoped, tag = 'scoped memory for tpu_custom_call.1']
    %12 = vsyncpa [#allocation3], 0
    %13 = vsyncpa [#allocation5], 0
    // Predicated region
    $region2: #{tpu_custom_call.1} parent=1 // pred_check
      _
    $region3: #{tpu_custom_call.1} parent=1 // pred_check_branch
      %15 = sbr.rel (0) target = $region5
    $region4: #{tpu_custom_call.1} parent=1 // pred_region
      _
    $region5: #{tpu_custom_call.1} parent=1 // pred_fallthru
      _
    // Predicated region
    $region6: #{tpu_custom_call.1} parent=1 // pred_check
      _
    $region7: #{tpu_custom_call.1} parent=1 // pred_check_branch
      %17 = sbr.rel (0) target = $region9
    $region8: #{tpu_custom_call.1} parent=1 // pred_region
      _
    $region9: #{tpu_custom_call.1} parent=1 // pred_fallthru
      _
    // Predicated region
    $region10: #{tpu_custom_call.1} parent=1 // pred_check
      _
    $region11: #{tpu_custom_call.1} parent=1 // pred_check_branch
      %19 = sbr.rel (0) target = $region13
    $region12: #{tpu_custom_call.1} parent=1 // pred_region
      _
    $region13: #{tpu_custom_call.1} parent=1 // pred_fallthru
      _
    // Predicated region
    $region14: #{tpu_custom_call.1} parent=1 // pred_check
      _
    $region15: #{tpu_custom_call.1} parent=1 // pred_check_branch
      %21 = sbr.rel (0) target = $region17
    $region16: #{tpu_custom_call.1} parent=1 // pred_region
      _
    $region17: #{tpu_custom_call.1} parent=1 // pred_fallthru
      _
    // Predicated region
    $region18: #{tpu_custom_call.1} parent=1 // pred_check
      _
    $region19: #{tpu_custom_call.1} parent=1 // pred_check_branch
      %23 = sbr.rel (0) target = $region21
    $region20: #{tpu_custom_call.1} parent=1 // pred_region
      _
    $region21: #{tpu_custom_call.1} parent=1 // pred_fallthru
      _
    %v24 = vld [vmem:[%s0] sm:$0xff]
    %v25 = vld [vmem:[%s0 + $0x8] sm:$0xff]
    %v26 = vld [vmem:[%s1] sm:$0xff]
    %v27 = vld [vmem:[%s1 + $0x8] sm:$0xff]
    %v28 = vlaneseq
    %v29 = vand.u32 %v28, 127
    %30 = vset.pattern.permute.xlu0 0
    %31 = vperm.xlu0 %30, %v24
    %v32 = vpop.permute.xlu0 %31
    %33 = vset.pattern.permute.xlu0 0
    %34 = vperm.xlu0 %33, %v25
    %v35 = vpop.permute.xlu0 %34
    %vm36 = vcmp.eq.s32.totalorder %v32, %v29
    %vm37 = vcmp.eq.s32.totalorder %v35, %v29
    %v38 = vsel %vm36, 1, 0
    %v39 = vsel %vm37, 1, 0
    %v40 = vcvt.s32.f32 %v38
    %v41 = vcvt.s32.f32 %v39
    %42 = vset.pattern.permute.xlu0 0
    %43 = vperm.xlu0 %42, %v26
    %v44 = vpop.permute.xlu0 %43
    %45 = vset.pattern.permute.xlu0 0
    %46 = vperm.xlu0 %45, %v27
    %v47 = vpop.permute.xlu0 %46
    %vm48 = vcmp.eq.s32.totalorder %v44, %v29
    %vm49 = vcmp.eq.s32.totalorder %v47, %v29
    %v50 = vsel %vm48, 1, 0
    %v51 = vsel %vm49, 1, 0
    %v52 = vcvt.s32.f32 %v50
    %v53 = vcvt.s32.f32 %v51
    %v54 = vld [vmem:[%s2] sm:$0xff]
    %v55 = vld [vmem:[%s2 + $0x8] sm:$0xff]
    %v56 = vld [vmem:[%s2 + $0x10] sm:$0xff]
    %v57 = vld [vmem:[%s2 + $0x18] sm:$0xff]
    %v58 = vld [vmem:[%s2 + $0x20] sm:$0xff]
    %v59 = vld [vmem:[%s2 + $0x28] sm:$0xff]
    %v60 = vld [vmem:[%s2 + $0x30] sm:$0xff]
    %v61 = vld [vmem:[%s2 + $0x38] sm:$0xff]
    %v62 = vld [vmem:[%s3] sm:$0xff]
    %v63 = vld [vmem:[%s3 + $0x8] sm:$0xff]
    %vm64 = vcmask 130048
    %v66 = vsel %vm64, %v52, 0
    %v69 = vsel %vm64, %v53, 0
    %71 = vmatpush.msra.mxu0 0.0
    %72 = vmatpush.msra.mxu0 0.0
    %73 = vmatpush.msra.mxu0 0.0
    %74 = vmatpush.msra.mxu0 0.0
    %75 = vmatpush.msra.mxu0 0.0
    %76 = vmatpush.msra.mxu0 0.0
    %77 = vmatpush.msra.mxu0 0.0
    %78 = vmatpush.msra.mxu0 0.0
    %79 = vmatpush.msra.mxu0 0.0
    %80 = vmatpush.msra.mxu0 0.0
    %81 = vmatpush.msra.mxu0 0.0
    %82 = vmatpush.msra.mxu0 0.0
    %83 = vmatpush.msra.mxu0 0.0
    %84 = vmatpush.msra.mxu0 0.0
    %v85 = vand.u32 %v63, 4294901760
    %86 = vmatpush.msra.mxu0 %v85
    %v87 = vand.u32 %v62, 4294901760
    %88 = vmatpush.msra.mxu0 %v87
    %v89 = vand.u32 %v66, 4294901760
    %v90 = vsub.f32 %v66, %v89
    %v91 = vand.u32 %v90, 4294901760
    %v92 = vsub.f32 %v90, %v91
    %v93 = vand.u32 %v92, 4294901760
    %94 = vmatmul.f32.gmra.mxu0 %v93
    %v95 = vpop.f32.mrf.mxu0
    %v96 = vadd.f32 0.0, %v95
    %v97 = vand.u32 %v69, 4294901760
    %v98 = vsub.f32 %v69, %v97
    %v99 = vand.u32 %v98, 4294901760
    %v100 = vsub.f32 %v98, %v99
    %v101 = vand.u32 %v100, 4294901760
    %102 = vmatmul.f32.gmra.mxu0 %v101
    %v103 = vpop.f32.mrf.mxu0
    %v104 = vadd.f32 0.0, %v103
    %105 = vdwg.mxu0
    %106 = vmatpush.msra.mxu0 0.0
    %107 = vmatpush.msra.mxu0 0.0
    %108 = vmatpush.msra.mxu0 0.0
    %109 = vmatpush.msra.mxu0 0.0
    %110 = vmatpush.msra.mxu0 0.0
    %111 = vmatpush.msra.mxu0 0.0
    %112 = vmatpush.msra.mxu0 0.0
    %113 = vmatpush.msra.mxu0 0.0
    %114 = vmatpush.msra.mxu0 0.0
    %115 = vmatpush.msra.mxu0 0.0
    %116 = vmatpush.msra.mxu0 0.0
    %117 = vmatpush.msra.mxu0 0.0
    %118 = vmatpush.msra.mxu0 0.0
    %119 = vmatpush.msra.mxu0 0.0
    %v120 = vand.u32 %v63, 4294901760
    %v121 = vsub.f32 %v63, %v120
    %v122 = vand.u32 %v121, 4294901760
    %v123 = vsub.f32 %v121, %v122
    %v124 = vand.u32 %v123, 4294901760
    %125 = vmatpush.msra.mxu0 %v124
    %v126 = vand.u32 %v62, 4294901760
    %v127 = vsub.f32 %v62, %v126
    %v128 = vand.u32 %v127, 4294901760
    %v129 = vsub.f32 %v127, %v128
    %v130 = vand.u32 %v129, 4294901760
    %131 = vmatpush.msra.mxu0 %v130
    %v132 = vand.u32 %v66, 4294901760
    %133 = vmatmul.f32.gmra.mxu0 %v132
    %v134 = vpop.f32.mrf.mxu0
    %v135 = vadd.f32 %v96, %v134
    %v136 = vand.u32 %v69, 4294901760
    %137 = vmatmul.f32.gmra.mxu0 %v136
    %v138 = vpop.f32.mrf.mxu0
    %v139 = vadd.f32 %v104, %v138
    %140 = vdwg.mxu0
    %141 = vmatpush.msra.mxu0 0.0
    %142 = vmatpush.msra.mxu0 0.0
    %143 = vmatpush.msra.mxu0 0.0
    %144 = vmatpush.msra.mxu0 0.0
    %145 = vmatpush.msra.mxu0 0.0
    %146 = vmatpush.msra.mxu0 0.0
    %147 = vmatpush.msra.mxu0 0.0
    %148 = vmatpush.msra.mxu0 0.0
    %149 = vmatpush.msra.mxu0 0.0
    %150 = vmatpush.msra.mxu0 0.0
    %151 = vmatpush.msra.mxu0 0.0
    %152 = vmatpush.msra.mxu0 0.0
    %153 = vmatpush.msra.mxu0 0.0
    %154 = vmatpush.msra.mxu0 0.0
    %v155 = vand.u32 %v63, 4294901760
    %v156 = vsub.f32 %v63, %v155
    %157 = vmatpush.msra.mxu0 %v156
    %v158 = vand.u32 %v62, 4294901760
    %v159 = vsub.f32 %v62, %v158
    %160 = vmatpush.msra.mxu0 %v159
    %v161 = vand.u32 %v66, 4294901760
    %v162 = vsub.f32 %v66, %v161
    %163 = vmatmul.f32.gmra.mxu0 %v162
    %v164 = vpop.f32.mrf.mxu0
    %v165 = vadd.f32 %v135, %v164
    %v166 = vand.u32 %v69, 4294901760
    %v167 = vsub.f32 %v69, %v166
    %168 = vmatmul.f32.gmra.mxu0 %v167
    %v169 = vpop.f32.mrf.mxu0
    %v170 = vadd.f32 %v139, %v169
    %171 = vdwg.mxu0
    %172 = vmatpush.msra.mxu0 0.0
    %173 = vmatpush.msra.mxu0 0.0
    %174 = vmatpush.msra.mxu0 0.0
    %175 = vmatpush.msra.mxu0 0.0
    %176 = vmatpush.msra.mxu0 0.0
    %177 = vmatpush.msra.mxu0 0.0
    %178 = vmatpush.msra.mxu0 0.0
    %179 = vmatpush.msra.mxu0 0.0
    %180 = vmatpush.msra.mxu0 0.0
    %181 = vmatpush.msra.mxu0 0.0
    %182 = vmatpush.msra.mxu0 0.0
    %183 = vmatpush.msra.mxu0 0.0
    %184 = vmatpush.msra.mxu0 0.0
    %185 = vmatpush.msra.mxu0 0.0
    %v186 = vand.u32 %v63, 4294901760
    %187 = vmatpush.msra.mxu0 %v186
    %v188 = vand.u32 %v62, 4294901760
    %189 = vmatpush.msra.mxu0 %v188
    %v190 = vand.u32 %v66, 4294901760
    %v191 = vsub.f32 %v66, %v190
    %v192 = vand.u32 %v191, 4294901760
    %193 = vmatmul.f32.gmra.mxu0 %v192
    %v194 = vpop.f32.mrf.mxu0
    %v195 = vadd.f32 %v165, %v194
    %v196 = vand.u32 %v69, 4294901760
    %v197 = vsub.f32 %v69, %v196
    %v198 = vand.u32 %v197, 4294901760
    %199 = vmatmul.f32.gmra.mxu0 %v198
    %v200 = vpop.f32.mrf.mxu0
    %v201 = vadd.f32 %v170, %v200
    %202 = vdwg.mxu0
    %203 = vmatpush.msra.mxu0 0.0
    %204 = vmatpush.msra.mxu0 0.0
    %205 = vmatpush.msra.mxu0 0.0
    %206 = vmatpush.msra.mxu0 0.0
    %207 = vmatpush.msra.mxu0 0.0
    %208 = vmatpush.msra.mxu0 0.0
    %209 = vmatpush.msra.mxu0 0.0
    %210 = vmatpush.msra.mxu0 0.0
    %211 = vmatpush.msra.mxu0 0.0
    %212 = vmatpush.msra.mxu0 0.0
    %213 = vmatpush.msra.mxu0 0.0
    %214 = vmatpush.msra.mxu0 0.0
    %215 = vmatpush.msra.mxu0 0.0
    %216 = vmatpush.msra.mxu0 0.0
    %v217 = vand.u32 %v63, 4294901760
    %v218 = vsub.f32 %v63, %v217
    %v219 = vand.u32 %v218, 4294901760
    %220 = vmatpush.msra.mxu0 %v219
    %v221 = vand.u32 %v62, 4294901760
    %v222 = vsub.f32 %v62, %v221
    %v223 = vand.u32 %v222, 4294901760
    %224 = vmatpush.msra.mxu0 %v223
    %v225 = vand.u32 %v66, 4294901760
    %226 = vmatmul.f32.gmra.mxu0 %v225
    %v227 = vpop.f32.mrf.mxu0
    %v228 = vadd.f32 %v195, %v227
    %v229 = vand.u32 %v69, 4294901760
    %230 = vmatmul.f32.gmra.mxu0 %v229
    %v231 = vpop.f32.mrf.mxu0
    %v232 = vadd.f32 %v201, %v231
    %233 = vdwg.mxu0
    %234 = vmatpush.msra.mxu0 0.0
    %235 = vmatpush.msra.mxu0 0.0
    %236 = vmatpush.msra.mxu0 0.0
    %237 = vmatpush.msra.mxu0 0.0
    %238 = vmatpush.msra.mxu0 0.0
    %239 = vmatpush.msra.mxu0 0.0
    %240 = vmatpush.msra.mxu0 0.0
    %241 = vmatpush.msra.mxu0 0.0
    %242 = vmatpush.msra.mxu0 0.0
    %243 = vmatpush.msra.mxu0 0.0
    %244 = vmatpush.msra.mxu0 0.0
    %245 = vmatpush.msra.mxu0 0.0
    %246 = vmatpush.msra.mxu0 0.0
    %247 = vmatpush.msra.mxu0 0.0
    %v248 = vand.u32 %v63, 4294901760
    %249 = vmatpush.msra.mxu0 %v248
    %v250 = vand.u32 %v62, 4294901760
    %251 = vmatpush.msra.mxu0 %v250
    %v252 = vand.u32 %v66, 4294901760
    %253 = vmatmul.f32.gmra.mxu0 %v252
    %v254 = vpop.f32.mrf.mxu0
    %v255 = vadd.f32 %v228, %v254
    %v256 = vand.u32 %v69, 4294901760
    %257 = vmatmul.f32.gmra.mxu0 %v256
    %v258 = vpop.f32.mrf.mxu0
    %v259 = vadd.f32 %v232, %v258
    %260 = vdwg.mxu0
    %v261 = vld [vmem:[%s4] sm:$0x1]
    %v263 = vperm.slane %v261, 0
    %vm265 = vcmask 523264
    %v267 = vsel %vm265, %v40, 0
    %v270 = vsel %vm265, %v41, 0
    %272 = vmatpush.msra.mxu0 0.0
    %273 = vmatpush.msra.mxu0 0.0
    %274 = vmatpush.msra.mxu0 0.0
    %275 = vmatpush.msra.mxu0 0.0
    %276 = vmatpush.msra.mxu0 0.0
    %277 = vmatpush.msra.mxu0 0.0
    %278 = vmatpush.msra.mxu0 0.0
    %279 = vmatpush.msra.mxu0 0.0
    %v280 = vand.u32 %v61, 4294901760
    %281 = vmatpush.msra.mxu0 %v280
    %v282 = vand.u32 %v60, 4294901760
    %283 = vmatpush.msra.mxu0 %v282
    %v284 = vand.u32 %v59, 4294901760
    %285 = vmatpush.msra.mxu0 %v284
    %v286 = vand.u32 %v58, 4294901760
    %287 = vmatpush.msra.mxu0 %v286
    %v288 = vand.u32 %v57, 4294901760
    %289 = vmatpush.msra.mxu0 %v288
    %v290 = vand.u32 %v56, 4294901760
    %291 = vmatpush.msra.mxu0 %v290
    %v292 = vand.u32 %v55, 4294901760
    %293 = vmatpush.msra.mxu0 %v292
    %v294 = vand.u32 %v54, 4294901760
    %295 = vmatpush.msra.mxu0 %v294
    %v296 = vand.u32 %v267, 4294901760
    %v297 = vsub.f32 %v267, %v296
    %v298 = vand.u32 %v297, 4294901760
    %v299 = vsub.f32 %v297, %v298
    %v300 = vand.u32 %v299, 4294901760
    %301 = vmatmul.f32.gmra.mxu0 %v300
    %v302 = vpop.f32.mrf.mxu0
    %v303 = vadd.f32 %v263, %v302
    %v304 = vand.u32 %v270, 4294901760
    %v305 = vsub.f32 %v270, %v304
    %v306 = vand.u32 %v305, 4294901760
    %v307 = vsub.f32 %v305, %v306
    %v308 = vand.u32 %v307, 4294901760
    %309 = vmatmul.f32.gmra.mxu0 %v308
    %v310 = vpop.f32.mrf.mxu0
    %v311 = vadd.f32 %v263, %v310
    %312 = vdwg.mxu0
    %313 = vmatpush.msra.mxu0 0.0
    %314 = vmatpush.msra.mxu0 0.0
    %315 = vmatpush.msra.mxu0 0.0
    %316 = vmatpush.msra.mxu0 0.0
    %317 = vmatpush.msra.mxu0 0.0
    %318 = vmatpush.msra.mxu0 0.0
    %319 = vmatpush.msra.mxu0 0.0
    %320 = vmatpush.msra.mxu0 0.0
    %v321 = vand.u32 %v61, 4294901760
    %v322 = vsub.f32 %v61, %v321
    %v323 = vand.u32 %v322, 4294901760
    %v324 = vsub.f32 %v322, %v323
    %v325 = vand.u32 %v324, 4294901760
    %326 = vmatpush.msra.mxu0 %v325
    %v327 = vand.u32 %v60, 4294901760
    %v328 = vsub.f32 %v60, %v327
    %v329 = vand.u32 %v328, 4294901760
    %v330 = vsub.f32 %v328, %v329
    %v331 = vand.u32 %v330, 4294901760
    %332 = vmatpush.msra.mxu0 %v331
    %v333 = vand.u32 %v59, 4294901760
    %v334 = vsub.f32 %v59, %v333
    %v335 = vand.u32 %v334, 4294901760
    %v336 = vsub.f32 %v334, %v335
    %v337 = vand.u32 %v336, 4294901760
    %338 = vmatpush.msra.mxu0 %v337
    %v339 = vand.u32 %v58, 4294901760
    %v340 = vsub.f32 %v58, %v339
    %v341 = vand.u32 %v340, 4294901760
    %v342 = vsub.f32 %v340, %v341
    %v343 = vand.u32 %v342, 4294901760
    %344 = vmatpush.msra.mxu0 %v343
    %v345 = vand.u32 %v57, 4294901760
    %v346 = vsub.f32 %v57, %v345
    %v347 = vand.u32 %v346, 4294901760
    %v348 = vsub.f32 %v346, %v347
    %v349 = vand.u32 %v348, 4294901760
    %350 = vmatpush.msra.mxu0 %v349
    %v351 = vand.u32 %v56, 4294901760
    %v352 = vsub.f32 %v56, %v351
    %v353 = vand.u32 %v352, 4294901760
    %v354 = vsub.f32 %v352, %v353
    %v355 = vand.u32 %v354, 4294901760
    %356 = vmatpush.msra.mxu0 %v355
    %v357 = vand.u32 %v55, 4294901760
    %v358 = vsub.f32 %v55, %v357
    %v359 = vand.u32 %v358, 4294901760
    %v360 = vsub.f32 %v358, %v359
    %v361 = vand.u32 %v360, 4294901760
    %362 = vmatpush.msra.mxu0 %v361
    %v363 = vand.u32 %v54, 4294901760
    %v364 = vsub.f32 %v54, %v363
    %v365 = vand.u32 %v364, 4294901760
    %v366 = vsub.f32 %v364, %v365
    %v367 = vand.u32 %v366, 4294901760
    %368 = vmatpush.msra.mxu0 %v367
    %v369 = vand.u32 %v267, 4294901760
    %370 = vmatmul.f32.gmra.mxu0 %v369
    %v371 = vpop.f32.mrf.mxu0
    %v372 = vadd.f32 %v303, %v371
    %v373 = vand.u32 %v270, 4294901760
    %374 = vmatmul.f32.gmra.mxu0 %v373
    %v375 = vpop.f32.mrf.mxu0
    %v376 = vadd.f32 %v311, %v375
    %377 = vdwg.mxu0
    %378 = vmatpush.msra.mxu0 0.0
    %379 = vmatpush.msra.mxu0 0.0
    %380 = vmatpush.msra.mxu0 0.0
    %381 = vmatpush.msra.mxu0 0.0
    %382 = vmatpush.msra.mxu0 0.0
    %383 = vmatpush.msra.mxu0 0.0
    %384 = vmatpush.msra.mxu0 0.0
    %385 = vmatpush.msra.mxu0 0.0
    %v386 = vand.u32 %v61, 4294901760
    %v387 = vsub.f32 %v61, %v386
    %388 = vmatpush.msra.mxu0 %v387
    %v389 = vand.u32 %v60, 4294901760
    %v390 = vsub.f32 %v60, %v389
    %391 = vmatpush.msra.mxu0 %v390
    %v392 = vand.u32 %v59, 4294901760
    %v393 = vsub.f32 %v59, %v392
    %394 = vmatpush.msra.mxu0 %v393
    %v395 = vand.u32 %v58, 4294901760
    %v396 = vsub.f32 %v58, %v395
    %397 = vmatpush.msra.mxu0 %v396
    %v398 = vand.u32 %v57, 4294901760
    %v399 = vsub.f32 %v57, %v398
    %400 = vmatpush.msra.mxu0 %v399
    %v401 = vand.u32 %v56, 4294901760
    %v402 = vsub.f32 %v56, %v401
    %403 = vmatpush.msra.mxu0 %v402
    %v404 = vand.u32 %v55, 4294901760
    %v405 = vsub.f32 %v55, %v404
    %406 = vmatpush.msra.mxu0 %v405
    %v407 = vand.u32 %v54, 4294901760
    %v408 = vsub.f32 %v54, %v407
    %409 = vmatpush.msra.mxu0 %v408
    %v410 = vand.u32 %v267, 4294901760
    %v411 = vsub.f32 %v267, %v410
    %412 = vmatmul.f32.gmra.mxu0 %v411
    %v413 = vpop.f32.mrf.mxu0
    %v414 = vadd.f32 %v372, %v413
    %v415 = vand.u32 %v270, 4294901760
    %v416 = vsub.f32 %v270, %v415
    %417 = vmatmul.f32.gmra.mxu0 %v416
    %v418 = vpop.f32.mrf.mxu0
    %v419 = vadd.f32 %v376, %v418
    %420 = vdwg.mxu0
    %421 = vmatpush.msra.mxu0 0.0
    %422 = vmatpush.msra.mxu0 0.0
    %423 = vmatpush.msra.mxu0 0.0
    %424 = vmatpush.msra.mxu0 0.0
    %425 = vmatpush.msra.mxu0 0.0
    %426 = vmatpush.msra.mxu0 0.0
    %427 = vmatpush.msra.mxu0 0.0
    %428 = vmatpush.msra.mxu0 0.0
    %v429 = vand.u32 %v61, 4294901760
    %430 = vmatpush.msra.mxu0 %v429
    %v431 = vand.u32 %v60, 4294901760
    %432 = vmatpush.msra.mxu0 %v431
    %v433 = vand.u32 %v59, 4294901760
    %434 = vmatpush.msra.mxu0 %v433
    %v435 = vand.u32 %v58, 4294901760
    %436 = vmatpush.msra.mxu0 %v435
    %v437 = vand.u32 %v57, 4294901760
    %438 = vmatpush.msra.mxu0 %v437
    %v439 = vand.u32 %v56, 4294901760
    %440 = vmatpush.msra.mxu0 %v439
    %v441 = vand.u32 %v55, 4294901760
    %442 = vmatpush.msra.mxu0 %v441
    %v443 = vand.u32 %v54, 4294901760
    %444 = vmatpush.msra.mxu0 %v443
    %v445 = vand.u32 %v267, 4294901760
    %v446 = vsub.f32 %v267, %v445
    %v447 = vand.u32 %v446, 4294901760
    %448 = vmatmul.f32.gmra.mxu0 %v447
    %v449 = vpop.f32.mrf.mxu0
    %v450 = vadd.f32 %v414, %v449
    %v451 = vand.u32 %v270, 4294901760
    %v452 = vsub.f32 %v270, %v451
    %v453 = vand.u32 %v452, 4294901760
    %454 = vmatmul.f32.gmra.mxu0 %v453
    %v455 = vpop.f32.mrf.mxu0
    %v456 = vadd.f32 %v419, %v455
    %457 = vdwg.mxu0
    %458 = vmatpush.msra.mxu0 0.0
    %459 = vmatpush.msra.mxu0 0.0
    %460 = vmatpush.msra.mxu0 0.0
    %461 = vmatpush.msra.mxu0 0.0
    %462 = vmatpush.msra.mxu0 0.0
    %463 = vmatpush.msra.mxu0 0.0
    %464 = vmatpush.msra.mxu0 0.0
    %465 = vmatpush.msra.mxu0 0.0
    %v466 = vand.u32 %v61, 4294901760
    %v467 = vsub.f32 %v61, %v466
    %v468 = vand.u32 %v467, 4294901760
    %469 = vmatpush.msra.mxu0 %v468
    %v470 = vand.u32 %v60, 4294901760
    %v471 = vsub.f32 %v60, %v470
    %v472 = vand.u32 %v471, 4294901760
    %473 = vmatpush.msra.mxu0 %v472
    %v474 = vand.u32 %v59, 4294901760
    %v475 = vsub.f32 %v59, %v474
    %v476 = vand.u32 %v475, 4294901760
    %477 = vmatpush.msra.mxu0 %v476
    %v478 = vand.u32 %v58, 4294901760
    %v479 = vsub.f32 %v58, %v478
    %v480 = vand.u32 %v479, 4294901760
    %481 = vmatpush.msra.mxu0 %v480
    %v482 = vand.u32 %v57, 4294901760
    %v483 = vsub.f32 %v57, %v482
    %v484 = vand.u32 %v483, 4294901760
    %485 = vmatpush.msra.mxu0 %v484
    %v486 = vand.u32 %v56, 4294901760
    %v487 = vsub.f32 %v56, %v486
    %v488 = vand.u32 %v487, 4294901760
    %489 = vmatpush.msra.mxu0 %v488
    %v490 = vand.u32 %v55, 4294901760
    %v491 = vsub.f32 %v55, %v490
    %v492 = vand.u32 %v491, 4294901760
    %493 = vmatpush.msra.mxu0 %v492
    %v494 = vand.u32 %v54, 4294901760
    %v495 = vsub.f32 %v54, %v494
    %v496 = vand.u32 %v495, 4294901760
    %497 = vmatpush.msra.mxu0 %v496
    %v498 = vand.u32 %v267, 4294901760
    %499 = vmatmul.f32.gmra.mxu0 %v498
    %v500 = vpop.f32.mrf.mxu0
    %v501 = vadd.f32 %v450, %v500
    %v502 = vand.u32 %v270, 4294901760
    %503 = vmatmul.f32.gmra.mxu0 %v502
    %v504 = vpop.f32.mrf.mxu0
    %v505 = vadd.f32 %v456, %v504
    %506 = vdwg.mxu0
    %507 = vmatpush.msra.mxu0 0.0
    %508 = vmatpush.msra.mxu0 0.0
    %509 = vmatpush.msra.mxu0 0.0
    %510 = vmatpush.msra.mxu0 0.0
    %511 = vmatpush.msra.mxu0 0.0
    %512 = vmatpush.msra.mxu0 0.0
    %513 = vmatpush.msra.mxu0 0.0
    %514 = vmatpush.msra.mxu0 0.0
    %v515 = vand.u32 %v61, 4294901760
    %516 = vmatpush.msra.mxu0 %v515
    %v517 = vand.u32 %v60, 4294901760
    %518 = vmatpush.msra.mxu0 %v517
    %v519 = vand.u32 %v59, 4294901760
    %520 = vmatpush.msra.mxu0 %v519
    %v521 = vand.u32 %v58, 4294901760
    %522 = vmatpush.msra.mxu0 %v521
    %v523 = vand.u32 %v57, 4294901760
    %524 = vmatpush.msra.mxu0 %v523
    %v525 = vand.u32 %v56, 4294901760
    %526 = vmatpush.msra.mxu0 %v525
    %v527 = vand.u32 %v55, 4294901760
    %528 = vmatpush.msra.mxu0 %v527
    %v529 = vand.u32 %v54, 4294901760
    %530 = vmatpush.msra.mxu0 %v529
    %v531 = vand.u32 %v267, 4294901760
    %532 = vmatmul.f32.gmra.mxu0 %v531
    %v533 = vpop.f32.mrf.mxu0
    %v534 = vadd.f32 %v501, %v533
    %v535 = vand.u32 %v270, 4294901760
    %536 = vmatmul.f32.gmra.mxu0 %v535
    %v537 = vpop.f32.mrf.mxu0
    %v538 = vadd.f32 %v505, %v537
    %539 = vdwg.mxu0
    %vm540 = vcmask 261120
    %541 = vst.msk [vmem:[#allocation2] sm:$0xff] %vm540, %v534
    %542 = vst.msk [vmem:[#allocation2 + $0x8] sm:$0xff] %vm540, %v538
    %543 = vst.msk [vmem:[#allocation4] sm:$0xff] %vm540, %v255
    %544 = vst.msk [vmem:[#allocation4 + $0x8] sm:$0xff] %vm540, %v259
    // Predicated region
    $region22: #{tpu_custom_call.1} parent=1 // pred_check
      _
    $region23: #{tpu_custom_call.1} parent=1 // pred_check_branch
      %546 = sbr.rel (0) target = $region25
    $region24: #{tpu_custom_call.1} parent=1 // pred_region
      %548 = vsyncadd [#allocation3], 0
      %s549 = sshll.u32 [#allocation2], 4
      %s550 = int_to_ptr.vmem [resolvable:$true] %s549
      %s551 = sshll.u32 %s5, 4
      %s552 = int_to_ptr.hbm [resolvable:$true] %s551
      %557 = dma.vmem_to_hbm [thread:$0]  %s550, 256, %s552, [#allocation3], 128, 128, 8
    $region25: #{tpu_custom_call.1} parent=1 // pred_fallthru
      _
    // Predicated region
    $region26: #{tpu_custom_call.1} parent=1 // pred_check
      _
    $region27: #{tpu_custom_call.1} parent=1 // pred_check_branch
      %559 = sbr.rel (0) target = $region29
    $region28: #{tpu_custom_call.1} parent=1 // pred_region
      %561 = vsyncadd [#allocation5], 0
      %s562 = sshll.u32 [#allocation4], 4
      %s563 = int_to_ptr.vmem [resolvable:$true] %s562
      %s564 = sshll.u32 %s6, 4
      %s565 = int_to_ptr.hbm [resolvable:$true] %s564
      %570 = dma.vmem_to_hbm [thread:$0]  %s563, 256, %s565, [#allocation5], 128, 128, 8
    $region29: #{tpu_custom_call.1} parent=1 // pred_fallthru
      _
    // Predicated region
    $region30: #{tpu_custom_call.1} parent=1 // pred_check
      _
    $region31: #{tpu_custom_call.1} parent=1 // pred_check_branch
      %572 = sbr.rel (0) target = $region33
    $region32: #{tpu_custom_call.1} parent=1 // pred_region
      %574 = dma.done [#allocation3], 256
    $region33: #{tpu_custom_call.1} parent=1 // pred_fallthru
      _
    // Predicated region
    $region34: #{tpu_custom_call.1} parent=1 // pred_check
      _
    $region35: #{tpu_custom_call.1} parent=1 // pred_check_branch
      %576 = sbr.rel (0) target = $region37
    $region36: #{tpu_custom_call.1} parent=1 // pred_region
      %578 = dma.done [#allocation5], 256
    $region37: #{tpu_custom_call.1} parent=1 // pred_fallthru
      _
    %579 = vsyncpa [#allocation3], 1
    %580 = vsyncpa [#allocation5], 1

</llo_original>
